<compile_context>
chip_gen: v6e
topology: v6e:2x2x1
jax: 0.10.0
libtpu: 0.0.40
codegen_flags: <defaults>
</compile_context>

<pallas_src>
import functools

import numpy as np
import jax
import jax.numpy as jnp
from jax.experimental import pallas as pl
from jax.experimental.pallas import tpu as pltpu

EPS = 0.003

_H1 = 256   # fcs1 output width
_H2 = 128   # fcs2 / fca1 / fc2 output width


def _cdiv(a, b):
    return -(-a // b)


def _round_up(x, m):
    return _cdiv(x, m) * m


# --------------------------------------------------------------------------- #
# Kernel
# --------------------------------------------------------------------------- #
def _critic_kernel(s_ref, a_ref,
                   ws1_ref, bs1_ref, wa1_ref, ba1_ref,
                   ws2_ref, bs2_ref, w2_ref, b2_ref,
                   w3_ref, b3_ref,
                   out_ref, *scratch, mm_dtype, fuse_fc2):
    """One batch tile of the critic forward pass.

    s_ref   : (TB, state_dim)    state tile
    a_ref   : (TB, action_dim)   action tile
    ws1_ref : (state_dim, 256),  bs1_ref: (1, 256)
    wa1_ref : (action_dim, 128), ba1_ref: (1, 128)
    ws2_ref : (256, 128),        bs2_ref: (1, 128)
    w2_ref  : (256, 128) = [W2s; W2a],  b2_ref: (1, 128)
    w3_ref  : (1, 128) row,      b3_ref: (1, 1)
    out_ref : (1, 1, TB)         lane-dense Q row for this tile
    scratch : optional (TB, 256) VMEM buffer (only when fuse_fc2=True)
    """
    def mm(x, w):
        # cast activations at the matmul input only; accumulate in f32
        return jnp.dot(x.astype(mm_dtype), w, preferred_element_type=jnp.float32)

    # layer 1: fcs1 / fca1 (weights resident in VMEM, already mm_dtype)
    s1 = jnp.maximum(mm(s_ref[...], ws1_ref[...]) + bs1_ref[...], 0.0)   # (TB,256)
    a1 = jnp.maximum(mm(a_ref[...], wa1_ref[...]) + ba1_ref[...], 0.0)   # (TB,128)

    # fcs2 + relu
    s2 = jnp.maximum(mm(s1, ws2_ref[...]) + bs2_ref[...], 0.0)           # (TB,128)

    # fc2 over cat((s2, a1), dim=1) + relu
    if fuse_fc2:
        # single K=256 MXU pass (fills the 256-deep v6e/v7x MXU): write the
        # concat into a VMEM scratch, then one dot against the full (256,128) W2
        cat_ref = scratch[0]
        cat_ref[:, :_H2] = s2.astype(mm_dtype)
        cat_ref[:, _H2:] = a1.astype(mm_dtype)
        x = jnp.dot(cat_ref[...], w2_ref[...],
                    preferred_element_type=jnp.float32) + b2_ref[...]
    else:
        # split form: two K=128 passes (preferred on v5e's 128x128 MXU)
        x = (mm(s2, w2_ref[:_H2, :]) + mm(a1, w2_ref[_H2:, :]) + b2_ref[...])
    x = jnp.maximum(x, 0.0)                                              # (TB,128)

    # fc3 (N=1): contract against the w3 row so the result comes out LANE-dense
    # as a (1, TB) row -> unmasked stores + contiguous writeback DMA.
    # Kept in f32 for accuracy (tiny M=1 matmul, negligible MXU cost).
    q_row = jnp.einsum('od,nd->on', w3_ref[...], x,
                       preferred_element_type=jnp.float32) + b3_ref[...]  # (1,TB)
    out_ref[...] = q_row.reshape(out_ref.shape).astype(out_ref.dtype)


# --------------------------------------------------------------------------- #
# Parameter packing (call ONCE when params change, not per forward)
# --------------------------------------------------------------------------- #
def pack_critic_params(params, matmul_dtype=jnp.bfloat16):
    """Kernel-ready params: MXU weights in matmul_dtype, biases / w3 in f32."""
    return dict(
        ws1=params["ws1"].astype(matmul_dtype), bs1=params["bs1"],
        wa1=params["wa1"].astype(matmul_dtype), ba1=params["ba1"],
        ws2=params["ws2"].astype(matmul_dtype), bs2=params["bs2"],
        w2=params["w2"].astype(matmul_dtype),  b2=params["b2"],
        w3=params["w3"].reshape(1, _H2).astype(jnp.float32),   # fc3 row, f32
        b3=params["b3"],
    )


# --------------------------------------------------------------------------- #
# Wrapper
# --------------------------------------------------------------------------- #
def _choose_tiling(n, tile_b, min_tiles):
    """Tile size: multiple of 8, >=min_tiles grid steps (v7x megacore),
    bounded padding even for awkward batch sizes."""
    tile_b = max(8, _round_up(int(tile_b), 8))
    num_tiles = max(_cdiv(n, tile_b), int(min_tiles), 1)
    num_tiles = min(num_tiles, max(_cdiv(n, 8), 1))
    tb = _round_up(_cdiv(n, num_tiles), 8)
    return tb, tb * num_tiles, num_tiles


def critic_forward(state, action, packed, *, tile_b=2048, min_tiles=2,
                   fuse_fc2=True):
    """Q(s,a) for a batch; batch-tiled Pallas kernel with resident weights.

    `packed` is the output of pack_critic_params (pack once, reuse).
    Set fuse_fc2=False on v5e (128-deep MXU gains nothing from the K=256 fuse).
    """
    n, sd = state.shape
    ad = action.shape[1]
    mm_dtype = packed["ws2"].dtype

    tb, n_pad, num_tiles = _choose_tiling(n, tile_b, min_tiles)

    state = state.astype(jnp.float32)
    action = action.astype(jnp.float32)
    if n_pad != n:
        state = jnp.pad(state, ((0, n_pad - n), (0, 0)))
        action = jnp.pad(action, ((0, n_pad - n), (0, 0)))

    p = packed

    def resident(arr):
        # full-array block, constant index -> stays in VMEM across grid steps
        return pl.BlockSpec(arr.shape, lambda i: (0, 0))

    in_specs = [
        pl.BlockSpec((tb, sd), lambda i: (i, 0)),      # state tile
        pl.BlockSpec((tb, ad), lambda i: (i, 0)),      # action tile
        resident(p["ws1"]), resident(p["bs1"]),
        resident(p["wa1"]), resident(p["ba1"]),
        resident(p["ws2"]), resident(p["bs2"]),
        resident(p["w2"]), resident(p["b2"]),
        resident(p["w3"]), resident(p["b3"]),
    ]
    # lane-dense output: one (1, 1, tb) row per tile
    out_spec = pl.BlockSpec((1, 1, tb), lambda i: (i, 0, 0))

    scratch_shapes = [pltpu.VMEM((tb, 2 * _H2), mm_dtype)] if fuse_fc2 else []

    kernel = functools.partial(_critic_kernel, mm_dtype=mm_dtype,
                               fuse_fc2=fuse_fc2)
    out = pl.pallas_call(
        kernel,
        out_shape=jax.ShapeDtypeStruct((num_tiles, 1, tb), jnp.float32),
        grid=(num_tiles,),
        in_specs=in_specs,
        out_specs=out_spec,
        scratch_shapes=scratch_shapes,
        compiler_params=pltpu.CompilerParams(
            dimension_semantics=("parallel",),          # megacore on v7x
            vmem_limit_bytes=48 * 1024 * 1024),         # < v7x 64 MiB physical
    )(state, action,
      p["ws1"], p["bs1"], p["wa1"], p["ba1"],
      p["ws2"], p["bs2"], p["w2"], p["b2"], p["w3"], p["b3"])

    return out.reshape(n_pad, 1)[:n]


# --------------------------------------------------------------------------- #
# Init / reference (mirrors the PyTorch module)
# --------------------------------------------------------------------------- #
def _uniform(key, shape, lo, hi):
    return jax.random.uniform(key, shape, dtype=jnp.float32, minval=lo, maxval=hi)


def init_critic_params(key, state_dim, action_dim):
    """Deterministic init mirroring the PyTorch module's __init__.

    fanin_init uses fanin = weight.size()[0] == out_features (as written in
    the reference code); biases use PyTorch's default ±1/sqrt(in_features).
    Weights are stored transposed ([in, out]) for the kernel.
    """
    ks = jax.random.split(key, 10)

    def fanin_w(k, out_dim, in_dim):
        v = 1.0 / np.sqrt(out_dim)  # size[0] of torch weight [out, in]
        return _uniform(k, (in_dim, out_dim), -v, v)

    def default_b(k, out_dim, in_dim):
        v = 1.0 / np.sqrt(in_dim)
        return _uniform(k, (1, out_dim), -v, v)

    ws1 = fanin_w(ks[0], 256, state_dim)
    bs1 = default_b(ks[1], 256, state_dim)
    ws2 = fanin_w(ks[2], 128, 256)
    bs2 = default_b(ks[3], 128, 256)
    wa1 = fanin_w(ks[4], 128, action_dim)
    ba1 = default_b(ks[5], 128, action_dim)
    w2 = fanin_w(ks[6], 128, 256)            # fc2 over concat(s2[128], a1[128])
    b2 = default_b(ks[7], 128, 256)
    w3 = _uniform(ks[8], (128, 1), -EPS, EPS)   # fc3 weight uniform(-EPS, EPS)
    b3 = default_b(ks[9], 1, 128)
    return dict(ws1=ws1, bs1=bs1, ws2=ws2, bs2=bs2, wa1=wa1, ba1=ba1,
                w2=w2, b2=b2, w3=w3, b3=b3)


def critic_reference(state, action, p):
    """Pure-JAX reference of the same forward pass (for sanity check)."""
    s1 = jax.nn.relu(state @ p["ws1"] + p["bs1"])
    s2 = jax.nn.relu(s1 @ p["ws2"] + p["bs2"])
    a1 = jax.nn.relu(action @ p["wa1"] + p["ba1"])
    x = jnp.concatenate([s2, a1], axis=1)
    x = jax.nn.relu(x @ p["w2"] + p["b2"])
    return x @ p["w3"] + p["b3"]


# --------------------------------------------------------------------------- #
if __name__ == "__main__":
    state_dim, action_dim, batch = 16, 8, 8

    key = jax.random.PRNGKey(0)
    k_params, k_state, k_action, k_state2, k_action2 = jax.random.split(key, 5)

    params = init_critic_params(k_params, state_dim, action_dim)
    state = jax.random.normal(k_state, (batch, state_dim), dtype=jnp.float32)
    action = jax.random.normal(k_action, (batch, action_dim), dtype=jnp.float32)

    q_ref = critic_reference(state, action, params)

    # packed once (not per forward): f32 for the exactness check, bf16 default
    packed_f32 = pack_critic_params(params, matmul_dtype=jnp.float32)
    packed_bf16 = pack_critic_params(params)   # bf16 default (MXU fast path)

    # 1) f32 path (tight vs reference), fused fc2
    q = critic_forward(state, action, packed_f32)
    jax.block_until_ready(q)
    np.testing.assert_allclose(np.asarray(q), np.asarray(q_ref),
                               rtol=1e-4, atol=1e-4)
    assert q.shape == (batch, 1) and q.dtype == jnp.float32

    # 2) multi-step grid path (exercises batch tiling + padding + lane-dense out)
    n2 = 37
    state2 = jax.random.normal(k_state2, (n2, state_dim), dtype=jnp.float32)
    action2 = jax.random.normal(k_action2, (n2, action_dim), dtype=jnp.float32)
    q2 = critic_forward(state2, action2, packed_f32, tile_b=16)
    jax.block_until_ready(q2)
    q2_ref = critic_reference(state2, action2, params)
    np.testing.assert_allclose(np.asarray(q2), np.asarray(q2_ref),
                               rtol=1e-4, atol=1e-4)

    # 3) default bf16 matmul-input path (f32 accumulation), fused fc2
    q_bf16 = critic_forward(state, action, packed_bf16)
    jax.block_until_ready(q_bf16)
    np.testing.assert_allclose(np.asarray(q_bf16), np.asarray(q_ref),
                               rtol=5e-2, atol=5e-2)

    # 4) split-fc2 path (v5e-preferred form), bf16
    q_split = critic_forward(state, action, packed_bf16, fuse_fc2=False)
    jax.block_until_ready(q_split)
    np.testing.assert_allclose(np.asarray(q_split), np.asarray(q_ref),
                               rtol=5e-2, atol=5e-2)

    print("KERNEL_OK")
</pallas_src>

<mosaic_0001>
module attributes {stable_mosaic.version = 11 : i64} {
  func.func @_critic_kernel(%arg0: i32, %arg1: memref<8x16xf32, #tpu.memory_space<vmem>>, %arg2: memref<8x8xf32, #tpu.memory_space<vmem>>, %arg3: memref<16x256xf32, #tpu.memory_space<vmem>>, %arg4: memref<1x256xf32, #tpu.memory_space<vmem>>, %arg5: memref<8x128xf32, #tpu.memory_space<vmem>>, %arg6: memref<1x128xf32, #tpu.memory_space<vmem>>, %arg7: memref<256x128xf32, #tpu.memory_space<vmem>>, %arg8: memref<1x128xf32, #tpu.memory_space<vmem>>, %arg9: memref<256x128xf32, #tpu.memory_space<vmem>>, %arg10: memref<1x128xf32, #tpu.memory_space<vmem>>, %arg11: memref<1x128xf32, #tpu.memory_space<vmem>>, %arg12: memref<1x1xf32, #tpu.memory_space<vmem>>, %arg13: memref<1x1x8xf32, #tpu.memory_space<vmem>>, %arg14: memref<8x256xf32, #tpu.memory_space<vmem>>) attributes {dimension_semantics = [#tpu.dimension_semantics<parallel>], iteration_bounds = array<i64: 1>, scalar_prefetch = 0 : i64, scratch_operands = 1 : i64, tpu.core_type = #tpu.core_type<tc>, window_params = [{transform_indices = @transform_0, window_bounds = array<i64: 8, 16>}, {transform_indices = @transform_1, window_bounds = array<i64: 8, 8>}, {pipeline_mode = #tpu.pipeline_mode<synchronous>, transform_indices = @transform_2, window_bounds = array<i64: 16, 256>}, {pipeline_mode = #tpu.pipeline_mode<synchronous>, transform_indices = @transform_3, window_bounds = array<i64: 1, 256>}, {pipeline_mode = #tpu.pipeline_mode<synchronous>, transform_indices = @transform_4, window_bounds = array<i64: 8, 128>}, {pipeline_mode = #tpu.pipeline_mode<synchronous>, transform_indices = @transform_5, window_bounds = array<i64: 1, 128>}, {pipeline_mode = #tpu.pipeline_mode<synchronous>, transform_indices = @transform_6, window_bounds = array<i64: 256, 128>}, {pipeline_mode = #tpu.pipeline_mode<synchronous>, transform_indices = @transform_7, window_bounds = array<i64: 1, 128>}, {pipeline_mode = #tpu.pipeline_mode<synchronous>, transform_indices = @transform_8, window_bounds = array<i64: 256, 128>}, {pipeline_mode = #tpu.pipeline_mode<synchronous>, transform_indices = @transform_9, window_bounds = array<i64: 1, 128>}, {pipeline_mode = #tpu.pipeline_mode<synchronous>, transform_indices = @transform_10, window_bounds = array<i64: 1, 128>}, {pipeline_mode = #tpu.pipeline_mode<synchronous>, transform_indices = @transform_11, window_bounds = array<i64: 1, 1>}, {transform_indices = @transform_12, window_bounds = array<i64: 1, 1, 8>}]} {
    %c0 = arith.constant 0 : index
    %c0_0 = arith.constant 0 : index
    %0 = vector.load %arg1[%c0, %c0_0] : memref<8x16xf32, #tpu.memory_space<vmem>>, vector<8x16xf32>
    %c0_1 = arith.constant 0 : index
    %c0_2 = arith.constant 0 : index
    %1 = vector.load %arg3[%c0_1, %c0_2] : memref<16x256xf32, #tpu.memory_space<vmem>>, vector<16x256xf32>
    %cst = arith.constant dense<0.000000e+00> : vector<8x256xf32>
    %2 = tpu.matmul %0, %1, %cst {dimension_numbers = #tpu.dot_dimension_numbers<[1], [0], [0], [1], [0, 0, 1, 1], [], []>} : vector<8x16xf32>, vector<16x256xf32>, vector<8x256xf32> -> vector<8x256xf32>
    %c0_3 = arith.constant 0 : index
    %c0_4 = arith.constant 0 : index
    %3 = vector.load %arg4[%c0_3, %c0_4] : memref<1x256xf32, #tpu.memory_space<vmem>>, vector<1x256xf32>
    %4 = vector.broadcast %3 : vector<1x256xf32> to vector<8x256xf32>
    %5 = arith.addf %2, %4 : vector<8x256xf32>
    %cst_5 = arith.constant 0.000000e+00 : f32
    %6 = vector.broadcast %cst_5 : f32 to vector<8x256xf32>
    %7 = arith.maximumf %5, %6 : vector<8x256xf32>
    %c0_6 = arith.constant 0 : index
    %c0_7 = arith.constant 0 : index
    %8 = vector.load %arg2[%c0_6, %c0_7] : memref<8x8xf32, #tpu.memory_space<vmem>>, vector<8x8xf32>
    %c0_8 = arith.constant 0 : index
    %c0_9 = arith.constant 0 : index
    %9 = vector.load %arg5[%c0_8, %c0_9] : memref<8x128xf32, #tpu.memory_space<vmem>>, vector<8x128xf32>
    %cst_10 = arith.constant dense<0.000000e+00> : vector<8x128xf32>
    %10 = tpu.matmul %8, %9, %cst_10 {dimension_numbers = #tpu.dot_dimension_numbers<[1], [0], [0], [1], [0, 0, 1, 1], [], []>} : vector<8x8xf32>, vector<8x128xf32>, vector<8x128xf32> -> vector<8x128xf32>
    %c0_11 = arith.constant 0 : index
    %c0_12 = arith.constant 0 : index
    %11 = vector.load %arg6[%c0_11, %c0_12] : memref<1x128xf32, #tpu.memory_space<vmem>>, vector<1x128xf32>
    %12 = vector.broadcast %11 : vector<1x128xf32> to vector<8x128xf32>
    %13 = arith.addf %10, %12 : vector<8x128xf32>
    %cst_13 = arith.constant 0.000000e+00 : f32
    %14 = vector.broadcast %cst_13 : f32 to vector<8x128xf32>
    %15 = arith.maximumf %13, %14 : vector<8x128xf32>
    %c0_14 = arith.constant 0 : index
    %c0_15 = arith.constant 0 : index
    %16 = vector.load %arg7[%c0_14, %c0_15] : memref<256x128xf32, #tpu.memory_space<vmem>>, vector<256x128xf32>
    %cst_16 = arith.constant dense<0.000000e+00> : vector<8x128xf32>
    %17 = tpu.matmul %7, %16, %cst_16 {dimension_numbers = #tpu.dot_dimension_numbers<[1], [0], [0], [1], [0, 0, 1, 1], [], []>} : vector<8x256xf32>, vector<256x128xf32>, vector<8x128xf32> -> vector<8x128xf32>
    %c0_17 = arith.constant 0 : index
    %c0_18 = arith.constant 0 : index
    %18 = vector.load %arg8[%c0_17, %c0_18] : memref<1x128xf32, #tpu.memory_space<vmem>>, vector<1x128xf32>
    %19 = vector.broadcast %18 : vector<1x128xf32> to vector<8x128xf32>
    %20 = arith.addf %17, %19 : vector<8x128xf32>
    %cst_19 = arith.constant 0.000000e+00 : f32
    %21 = vector.broadcast %cst_19 : f32 to vector<8x128xf32>
    %22 = arith.maximumf %20, %21 : vector<8x128xf32>
    %c0_20 = arith.constant 0 : index
    %c0_21 = arith.constant 0 : index
    %23 = vector.load %arg14[%c0_20, %c0_21] : memref<8x256xf32, #tpu.memory_space<vmem>>, vector<8x128xf32>
    tpu.vector_store %arg14[%c0_20, %c0_21], %22 {strides = array<i32>} : memref<8x256xf32, #tpu.memory_space<vmem>>, vector<8x128xf32>,
    %c0_22 = arith.constant 0 : index
    %c128 = arith.constant 128 : index
    %24 = vector.load %arg14[%c0_22, %c128] : memref<8x256xf32, #tpu.memory_space<vmem>>, vector<8x128xf32>
    tpu.vector_store %arg14[%c0_22, %c128], %15 {strides = array<i32>} : memref<8x256xf32, #tpu.memory_space<vmem>>, vector<8x128xf32>,
    %c0_23 = arith.constant 0 : index
    %c0_24 = arith.constant 0 : index
    %25 = vector.load %arg14[%c0_23, %c0_24] : memref<8x256xf32, #tpu.memory_space<vmem>>, vector<8x256xf32>
    %c0_25 = arith.constant 0 : index
    %c0_26 = arith.constant 0 : index
    %26 = vector.load %arg9[%c0_25, %c0_26] : memref<256x128xf32, #tpu.memory_space<vmem>>, vector<256x128xf32>
    %cst_27 = arith.constant dense<0.000000e+00> : vector<8x128xf32>
    %27 = tpu.matmul %25, %26, %cst_27 {dimension_numbers = #tpu.dot_dimension_numbers<[1], [0], [0], [1], [0, 0, 1, 1], [], []>} : vector<8x256xf32>, vector<256x128xf32>, vector<8x128xf32> -> vector<8x128xf32>
    %c0_28 = arith.constant 0 : index
    %c0_29 = arith.constant 0 : index
    %28 = vector.load %arg10[%c0_28, %c0_29] : memref<1x128xf32, #tpu.memory_space<vmem>>, vector<1x128xf32>
    %29 = vector.broadcast %28 : vector<1x128xf32> to vector<8x128xf32>
    %30 = arith.addf %27, %29 : vector<8x128xf32>
    %cst_30 = arith.constant 0.000000e+00 : f32
    %31 = vector.broadcast %cst_30 : f32 to vector<8x128xf32>
    %32 = arith.maximumf %30, %31 : vector<8x128xf32>
    %c0_31 = arith.constant 0 : index
    %c0_32 = arith.constant 0 : index
    %33 = vector.load %arg11[%c0_31, %c0_32] : memref<1x128xf32, #tpu.memory_space<vmem>>, vector<1x128xf32>
    "tpu.trace_start"() <{level = 10 : i32, message = "od,nd->on"}> : () -> ()
    %cst_33 = arith.constant dense<0.000000e+00> : vector<1x8xf32>
    %34 = tpu.matmul %33, %32, %cst_33 {dimension_numbers = #tpu.dot_dimension_numbers<[1], [1], [0], [0], [0, 0, 1, 0], [], []>} : vector<1x128xf32>, vector<8x128xf32>, vector<1x8xf32> -> vector<1x8xf32>
    "tpu.trace_stop"() : () -> ()
    %c0_34 = arith.constant 0 : index
    %c0_35 = arith.constant 0 : index
    %35 = vector.load %arg12[%c0_34, %c0_35] : memref<1x1xf32, #tpu.memory_space<vmem>>, vector<1x1xf32>
    %36 = vector.broadcast %35 : vector<1x1xf32> to vector<1x8xf32>
    %37 = arith.addf %34, %36 : vector<1x8xf32>
    %38 = vector.shape_cast %37 : vector<1x8xf32> to vector<1x1x8xf32>
    %c0_36 = arith.constant 0 : index
    %c0_37 = arith.constant 0 : index
    %c0_38 = arith.constant 0 : index
    %39 = vector.load %arg13[%c0_36, %c0_37, %c0_38] : memref<1x1x8xf32, #tpu.memory_space<vmem>>, vector<1x1x8xf32>
    tpu.vector_store %arg13[%c0_36, %c0_37, %c0_38], %38 {strides = array<i32>} : memref<1x1x8xf32, #tpu.memory_space<vmem>>, vector<1x1x8xf32>,
    return
  }
  func.func @transform_0(%arg0: i32) -> (i32, i32) {
    %c0_i32 = arith.constant 0 : i32
    %c0_i32_0 = arith.constant 0 : i32
    return %arg0, %c0_i32 : i32, i32
  }
  func.func @transform_1(%arg0: i32) -> (i32, i32) {
    %c0_i32 = arith.constant 0 : i32
    %c0_i32_0 = arith.constant 0 : i32
    return %arg0, %c0_i32 : i32, i32
  }
  func.func @transform_2(%arg0: i32) -> (i32, i32) {
    %c0_i32 = arith.constant 0 : i32
    %c0_i32_0 = arith.constant 0 : i32
    %c0_i32_1 = arith.constant 0 : i32
    return %c0_i32, %c0_i32_0 : i32, i32
  }
  func.func @transform_3(%arg0: i32) -> (i32, i32) {
    %c0_i32 = arith.constant 0 : i32
    %c0_i32_0 = arith.constant 0 : i32
    %c0_i32_1 = arith.constant 0 : i32
    return %c0_i32, %c0_i32_0 : i32, i32
  }
  func.func @transform_4(%arg0: i32) -> (i32, i32) {
    %c0_i32 = arith.constant 0 : i32
    %c0_i32_0 = arith.constant 0 : i32
    %c0_i32_1 = arith.constant 0 : i32
    return %c0_i32, %c0_i32_0 : i32, i32
  }
  func.func @transform_5(%arg0: i32) -> (i32, i32) {
    %c0_i32 = arith.constant 0 : i32
    %c0_i32_0 = arith.constant 0 : i32
    %c0_i32_1 = arith.constant 0 : i32
    return %c0_i32, %c0_i32_0 : i32, i32
  }
  func.func @transform_6(%arg0: i32) -> (i32, i32) {
    %c0_i32 = arith.constant 0 : i32
    %c0_i32_0 = arith.constant 0 : i32
    %c0_i32_1 = arith.constant 0 : i32
    return %c0_i32, %c0_i32_0 : i32, i32
  }
  func.func @transform_7(%arg0: i32) -> (i32, i32) {
    %c0_i32 = arith.constant 0 : i32
    %c0_i32_0 = arith.constant 0 : i32
    %c0_i32_1 = arith.constant 0 : i32
    return %c0_i32, %c0_i32_0 : i32, i32
  }
  func.func @transform_8(%arg0: i32) -> (i32, i32) {
    %c0_i32 = arith.constant 0 : i32
    %c0_i32_0 = arith.constant 0 : i32
    %c0_i32_1 = arith.constant 0 : i32
    return %c0_i32, %c0_i32_0 : i32, i32
  }
  func.func @transform_9(%arg0: i32) -> (i32, i32) {
    %c0_i32 = arith.constant 0 : i32
    %c0_i32_0 = arith.constant 0 : i32
    %c0_i32_1 = arith.constant 0 : i32
    return %c0_i32, %c0_i32_0 : i32, i32
  }
  func.func @transform_10(%arg0: i32) -> (i32, i32) {
    %c0_i32 = arith.constant 0 : i32
    %c0_i32_0 = arith.constant 0 : i32
    %c0_i32_1 = arith.constant 0 : i32
    return %c0_i32, %c0_i32_0 : i32, i32
  }
  func.func @transform_11(%arg0: i32) -> (i32, i32) {
    %c0_i32 = arith.constant 0 : i32
    %c0_i32_0 = arith.constant 0 : i32
    %c0_i32_1 = arith.constant 0 : i32
    return %c0_i32, %c0_i32_0 : i32, i32
  }
  func.func @transform_12(%arg0: i32) -> (i32, i32, i32) {
    %c0_i32 = arith.constant 0 : i32
    %c0_i32_0 = arith.constant 0 : i32
    %c0_i32_1 = arith.constant 0 : i32
    return %arg0, %c0_i32, %c0_i32_0 : i32, i32, i32
  }
}

</mosaic_0001>

<llo_original>
// kernel: tpu_custom_call.1
$region0: #{tpu_custom_call.1}
  #allocation0 [shape = 'u32[]', space=smem, size = 0x4, offset = 0x4, fixed_abs, tag = 'smem constant byte address 0x4 - core index']
  #allocation1 [shape = 'u32[144,128]{1,0:T(1,128)}', space=vmem, size = 0x12000, scoped, tag = 'internal scratch']
  #allocation2 [shape = 'f32[8,256]{1,0:T(8,128)}', space=vmem, size = 0x2000, scoped, tag = 'scratch operand']
  #allocation3 [shape = 'f32[1,1]{1,0:T(1,128)S(1)}', space=vmem, size = 0x200, scoped, tag = 'scoped memory for tpu_custom_call.1']
  %s0 = inlined_call_operand.hbm [shape: f32[8,16], index: 0, kind: input, shape index: {}]
  %s1 = inlined_call_operand.hbm [shape: f32[8,8], index: 1, kind: input, shape index: {}]
  %s2 = inlined_call_operand.hbm [shape: f32[16,256], index: 2, kind: input, shape index: {}]
  %s3 = inlined_call_operand.hbm [shape: f32[1,256], index: 3, kind: input, shape index: {}]
  %s4 = inlined_call_operand.vmem [shape: f32[8,128], index: 4, kind: input, shape index: {}]
  %s5 = inlined_call_operand.vmem [shape: f32[1,128], index: 5, kind: input, shape index: {}]
  %s6 = inlined_call_operand.hbm [shape: f32[256,128], index: 6, kind: input, shape index: {}]
  %s7 = inlined_call_operand.vmem [shape: f32[1,128], index: 7, kind: input, shape index: {}]
  %s8 = inlined_call_operand.hbm [shape: f32[256,128], index: 8, kind: input, shape index: {}]
  %s9 = inlined_call_operand.vmem [shape: f32[1,128], index: 9, kind: input, shape index: {}]
  %s10 = inlined_call_operand.vmem [shape: f32[1,128], index: 10, kind: input, shape index: {}]
  %s11 = inlined_call_operand.<no memory space> [shape: f32[1,1], index: 11, kind: input, shape index: {}]
  %s12 = inlined_call_operand.hbm [shape: f32[1,1,8], index: 12, kind: output, shape index: {}]
  %s13 = sld [smem:[#allocation0]]
  $region82: #{tpu_custom_call.1} parent=0
    _
  %s15 = ssub.s32 1, %s13
  %s16 = scalar_select 0, %s15, %s13
  %v17 = vstv %s11
  %18 = vst [vmem:[#allocation3] sm:$0x1] %v17
  $region1: #{tpu_custom_call.1} parent=0
    #allocation4 [shape = 'u8[4096]{0}', space=vmem, size = 0x1000, scoped, tag = 'input window, operand 0, single buffered']
    #allocation5 [shape = 's32[1]{0}', space=sflag, size = 0x4, scoped, tag = 'scoped memory for tpu_custom_call.1']
    #allocation6 [shape = 's32[1]{0}', space=sflag, size = 0x4, scoped, tag = 'scoped memory for tpu_custom_call.1']
    #allocation7 [shape = 'u8[4096]{0}', space=vmem, size = 0x1000, scoped, tag = 'input window, operand 1, single buffered']
    #allocation8 [shape = 's32[1]{0}', space=sflag, size = 0x4, scoped, tag = 'scoped memory for tpu_custom_call.1']
    #allocation9 [shape = 'u8[16384]{0}', space=vmem, size = 0x4000, scoped, tag = 'input window, operand 2, single buffered']
    #allocation10 [shape = 'u8[1024]{0}', space=vmem, size = 0x400, scoped, tag = 'input window, operand 3, single buffered']
    #allocation11 [shape = 's32[1]{0}', space=sflag, size = 0x4, scoped, tag = 'scoped memory for tpu_custom_call.1']
    #allocation12 [shape = 'u8[131072]{0}', space=vmem, size = 0x20000, scoped, tag = 'input window, operand 6, single buffered']
    #allocation13 [shape = 'u8[131072]{0}', space=vmem, size = 0x20000, scoped, tag = 'input window, operand 8, single buffered']
    #allocation14 [shape = 's32[1]{0}', space=sflag, size = 0x4, scoped, tag = 'scoped memory for tpu_custom_call.1']
    #allocation15 [shape = 'u8[512]{0}', space=vmem, size = 0x400, scoped, tag = 'output window, operand 0, single buffered']
    %19 = vsyncpa [#allocation5], 0
    %20 = vsyncpa [#allocation8], 0
    %21 = vsyncpa [#allocation11], 0
    %22 = vsyncpa [#allocation14], 0
    %23 = vsyncpa [#allocation6], 0
    // Predicated region
    $region2: #{tpu_custom_call.1} parent=1 // pred_check
      _
    $region3: #{tpu_custom_call.1} parent=1 // pred_check_branch
      %25 = sbr.rel (0) target = $region5
    $region4: #{tpu_custom_call.1} parent=1 // pred_region
      %s27 = ssub.s32 128, 128
      %28 = vsyncadd [#allocation5], %s27
      %s30 = sshll.u32 [#allocation4], 4
      %s31 = int_to_ptr.vmem [resolvable:$true] %s30
      %33 = dma.hbm_to_vmem [thread:$0]  %s0, 128, %s31, [#allocation5]
    $region5: #{tpu_custom_call.1} parent=1 // pred_fallthru
      _
    // Predicated region
    $region6: #{tpu_custom_call.1} parent=1 // pred_check
      _
    $region7: #{tpu_custom_call.1} parent=1 // pred_check_branch
      %35 = sbr.rel (0) target = $region9
    $region8: #{tpu_custom_call.1} parent=1 // pred_region
      %s37 = ssub.s32 128, 128
      %38 = vsyncadd [#allocation8], %s37
      %s40 = sshll.u32 [#allocation7], 4
      %s41 = int_to_ptr.vmem [resolvable:$true] %s40
      %43 = dma.hbm_to_vmem [thread:$0]  %s1, 128, %s41, [#allocation8]
    $region9: #{tpu_custom_call.1} parent=1 // pred_fallthru
      _
    // Predicated region
    $region10: #{tpu_custom_call.1} parent=1 // pred_check
      _
    $region11: #{tpu_custom_call.1} parent=1 // pred_check_branch
      %45 = sbr.rel (0) target = $region13
    $region12: #{tpu_custom_call.1} parent=1 // pred_region
      %s47 = ssub.s32 512, 512
      %48 = vsyncadd [#allocation8], %s47
      %s49 = sshll.u32 [#allocation9], 4
      %s50 = int_to_ptr.vmem [resolvable:$true] %s49
      %55 = dma.hbm_to_vmem [thread:$0]  %s2, 512, %s50, [#allocation8], 256, 256, 16
    $region13: #{tpu_custom_call.1} parent=1 // pred_fallthru
      _
    // Predicated region
    $region14: #{tpu_custom_call.1} parent=1 // pred_check
      _
    $region15: #{tpu_custom_call.1} parent=1 // pred_check_branch
      %57 = sbr.rel (0) target = $region17
    $region16: #{tpu_custom_call.1} parent=1 // pred_region
      %s59 = ssub.s32 32, 32
      %60 = vsyncadd [#allocation11], %s59
      %s62 = sshll.u32 [#allocation10], 4
      %s63 = int_to_ptr.vmem [resolvable:$true] %s62
      %65 = dma.hbm_to_vmem [thread:$0]  %s3, 32, %s63, [#allocation11]
    $region17: #{tpu_custom_call.1} parent=1 // pred_fallthru
      _
    // Predicated region
    $region18: #{tpu_custom_call.1} parent=1 // pred_check
      _
    $region19: #{tpu_custom_call.1} parent=1 // pred_check_branch
      %67 = sbr.rel (0) target = $region21
    $region20: #{tpu_custom_call.1} parent=1 // pred_region
      _
    $region21: #{tpu_custom_call.1} parent=1 // pred_fallthru
      _
    // Predicated region
    $region22: #{tpu_custom_call.1} parent=1 // pred_check
      _
    $region23: #{tpu_custom_call.1} parent=1 // pred_check_branch
      %69 = sbr.rel (0) target = $region25
    $region24: #{tpu_custom_call.1} parent=1 // pred_region
      _
    $region25: #{tpu_custom_call.1} parent=1 // pred_fallthru
      _
    // Predicated region
    $region26: #{tpu_custom_call.1} parent=1 // pred_check
      _
    $region27: #{tpu_custom_call.1} parent=1 // pred_check_branch
      %71 = sbr.rel (0) target = $region29
    $region28: #{tpu_custom_call.1} parent=1 // pred_region
      %s73 = ssub.s32 4096, 4096
      %74 = vsyncadd [#allocation11], %s73
      %s75 = sshll.u32 [#allocation12], 4
      %s76 = int_to_ptr.vmem [resolvable:$true] %s75
      %81 = dma.hbm_to_vmem [thread:$0]  %s6, 4096, %s76, [#allocation11], 128, 128, 8
    $region29: #{tpu_custom_call.1} parent=1 // pred_fallthru
      _
    // Predicated region
    $region30: #{tpu_custom_call.1} parent=1 // pred_check
      _
    $region31: #{tpu_custom_call.1} parent=1 // pred_check_branch
      %83 = sbr.rel (0) target = $region33
    $region32: #{tpu_custom_call.1} parent=1 // pred_region
      _
    $region33: #{tpu_custom_call.1} parent=1 // pred_fallthru
      _
    // Predicated region
    $region34: #{tpu_custom_call.1} parent=1 // pred_check
      _
    $region35: #{tpu_custom_call.1} parent=1 // pred_check_branch
      %85 = sbr.rel (0) target = $region37
    $region36: #{tpu_custom_call.1} parent=1 // pred_region
      %s87 = ssub.s32 4096, 4096
      %88 = vsyncadd [#allocation14], %s87
      %s89 = sshll.u32 [#allocation13], 4
      %s90 = int_to_ptr.vmem [resolvable:$true] %s89
      %95 = dma.hbm_to_vmem [thread:$0]  %s8, 4096, %s90, [#allocation14], 128, 128, 8
    $region37: #{tpu_custom_call.1} parent=1 // pred_fallthru
      _
    // Predicated region
    $region38: #{tpu_custom_call.1} parent=1 // pred_check
      _
    $region39: #{tpu_custom_call.1} parent=1 // pred_check_branch
      %97 = sbr.rel (0) target = $region41
    $region40: #{tpu_custom_call.1} parent=1 // pred_region
      _
    $region41: #{tpu_custom_call.1} parent=1 // pred_fallthru
      _
    // Predicated region
    $region42: #{tpu_custom_call.1} parent=1 // pred_check
      _
    $region43: #{tpu_custom_call.1} parent=1 // pred_check_branch
      %99 = sbr.rel (0) target = $region45
    $region44: #{tpu_custom_call.1} parent=1 // pred_region
      _
    $region45: #{tpu_custom_call.1} parent=1 // pred_fallthru
      _
    // Predicated region
    $region46: #{tpu_custom_call.1} parent=1 // pred_check
      _
    $region47: #{tpu_custom_call.1} parent=1 // pred_check_branch
      %101 = sbr.rel (0) target = $region49
    $region48: #{tpu_custom_call.1} parent=1 // pred_region
      _
    $region49: #{tpu_custom_call.1} parent=1 // pred_fallthru
      _
    // Predicated region
    $region50: #{tpu_custom_call.1} parent=1 // pred_check
      _
    $region51: #{tpu_custom_call.1} parent=1 // pred_check_branch
      %103 = sbr.rel (0) target = $region53
    $region52: #{tpu_custom_call.1} parent=1 // pred_region
      %104 = dma.done [#allocation5], 128
    $region53: #{tpu_custom_call.1} parent=1 // pred_fallthru
      _
    // Predicated region
    $region54: #{tpu_custom_call.1} parent=1 // pred_check
      _
    $region55: #{tpu_custom_call.1} parent=1 // pred_check_branch
      %106 = sbr.rel (0) target = $region57
    $region56: #{tpu_custom_call.1} parent=1 // pred_region
      %107 = dma.done [#allocation8], 128
    $region57: #{tpu_custom_call.1} parent=1 // pred_fallthru
      _
    // Predicated region
    $region58: #{tpu_custom_call.1} parent=1 // pred_check
      _
    $region59: #{tpu_custom_call.1} parent=1 // pred_check_branch
      %109 = sbr.rel (0) target = $region61
    $region60: #{tpu_custom_call.1} parent=1 // pred_region
      %110 = dma.done [#allocation8], 512
    $region61: #{tpu_custom_call.1} parent=1 // pred_fallthru
      _
    // Predicated region
    $region62: #{tpu_custom_call.1} parent=1 // pred_check
      _
    $region63: #{tpu_custom_call.1} parent=1 // pred_check_branch
      %112 = sbr.rel (0) target = $region65
    $region64: #{tpu_custom_call.1} parent=1 // pred_region
      %113 = dma.done [#allocation11], 32
    $region65: #{tpu_custom_call.1} parent=1 // pred_fallthru
      _
    // Predicated region
    $region66: #{tpu_custom_call.1} parent=1 // pred_check
      _
    $region67: #{tpu_custom_call.1} parent=1 // pred_check_branch
      %115 = sbr.rel (0) target = $region69
    $region68: #{tpu_custom_call.1} parent=1 // pred_region
      %116 = dma.done [#allocation11], 4096
    $region69: #{tpu_custom_call.1} parent=1 // pred_fallthru
      _
    // Predicated region
    $region70: #{tpu_custom_call.1} parent=1 // pred_check
      _
    $region71: #{tpu_custom_call.1} parent=1 // pred_check_branch
      %118 = sbr.rel (0) target = $region73
    $region72: #{tpu_custom_call.1} parent=1 // pred_region
      %119 = dma.done [#allocation14], 4096
    $region73: #{tpu_custom_call.1} parent=1 // pred_fallthru
      _
    %v120 = vld [vmem:[#allocation4] sm:$0xff]
    %v121 = vld [vmem:[#allocation9] sm:$0xff]
    %v122 = vld [vmem:[#allocation9 + $0x8] sm:$0xff]
    %v123 = vld [vmem:[#allocation9 + $0x10] sm:$0xff]
    %v124 = vld [vmem:[#allocation9 + $0x18] sm:$0xff]
    %v125 = vld [vmem:[#allocation10] sm:$0x3]
    %v127 = vlaneseq
    %v128 = vshrl.u32 %v127, 7
    %v129 = vsub.s32 0, %v128
    %v130 = vrot.slane %v125, %v129
    %v131 = vlaneseq
    %v132 = vshrl.u32 %v131, 7
    %v133 = vsub.s32 1, %v132
    %v134 = vrot.slane %v125, %v133
    %vm137 = vcmask 130048
    %v139 = vsel %vm137, %v120, 0
    %141 = vmatprep.subr.mxu0 0.0
    %142 = vmatpush1.msra.mxu0 0.0
    %143 = vmatprep.subr.mxu0 0.0
    %144 = vmatpush1.msra.mxu0 0.0
    %145 = vmatprep.subr.mxu0 0.0
    %146 = vmatpush1.msra.mxu0 0.0
    %147 = vmatprep.subr.mxu0 0.0
    %148 = vmatpush1.msra.mxu0 0.0
    %149 = vmatprep.subr.mxu0 0.0
    %150 = vmatpush1.msra.mxu0 0.0
    %151 = vmatprep.subr.mxu0 0.0
    %152 = vmatpush1.msra.mxu0 0.0
    %153 = vmatprep.subr.mxu0 0.0
    %154 = vmatpush1.msra.mxu0 0.0
    %155 = vmatprep.subr.mxu0 0.0
    %156 = vmatpush1.msra.mxu0 0.0
    %157 = vmatprep.subr.mxu0 0.0
    %158 = vmatpush1.msra.mxu0 0.0
    %159 = vmatprep.subr.mxu0 0.0
    %160 = vmatpush1.msra.mxu0 0.0
    %161 = vmatprep.subr.mxu0 0.0
    %162 = vmatpush1.msra.mxu0 0.0
    %163 = vmatprep.subr.mxu0 0.0
    %164 = vmatpush1.msra.mxu0 0.0
    %165 = vmatprep.subr.mxu0 0.0
    %166 = vmatpush1.msra.mxu0 0.0
    %167 = vmatprep.subr.mxu0 0.0
    %168 = vmatpush1.msra.mxu0 0.0
    %169 = vmatprep.subr.mxu0 %v124
    %170 = vmatpush1.msra.mxu0 %v123
    %171 = vmatprep.subr.mxu0 %v122
    %172 = vmatpush1.msra.mxu0 %v121
    %173 = vmatprep.subr.mxu0 0.0
    %174 = vmatpush2.msra.mxu0 0.0
    %175 = vmatprep.subr.mxu0 0.0
    %176 = vmatpush2.msra.mxu0 0.0
    %177 = vmatprep.subr.mxu0 0.0
    %178 = vmatpush2.msra.mxu0 0.0
    %179 = vmatprep.subr.mxu0 0.0
    %180 = vmatpush2.msra.mxu0 0.0
    %181 = vmatprep.subr.mxu0 0.0
    %182 = vmatpush2.msra.mxu0 0.0
    %183 = vmatprep.subr.mxu0 0.0
    %184 = vmatpush2.msra.mxu0 0.0
    %185 = vmatprep.subr.mxu0 0.0
    %186 = vmatpush2.msra.mxu0 0.0
    %187 = vmatprep.subr.mxu0 0.0
    %188 = vmatpush2.msra.mxu0 0.0
    %189 = vmatprep.subr.mxu0 0.0
    %190 = vmatpush2.msra.mxu0 0.0
    %191 = vmatprep.subr.mxu0 0.0
    %192 = vmatpush2.msra.mxu0 0.0
    %193 = vmatprep.subr.mxu0 0.0
    %194 = vmatpush2.msra.mxu0 0.0
    %195 = vmatprep.subr.mxu0 0.0
    %196 = vmatpush2.msra.mxu0 0.0
    %197 = vmatprep.subr.mxu0 0.0
    %198 = vmatpush2.msra.mxu0 0.0
    %199 = vmatprep.subr.mxu0 0.0
    %200 = vmatpush2.msra.mxu0 0.0
    %201 = vmatprep.subr.mxu0 0.0
    %202 = vmatpush2.msra.mxu0 0.0
    %203 = vmatprep.subr.mxu0 0.0
    %204 = vmatpush2.msra.mxu0 0.0
    %205 = vmatprep.mubr.f32.mxu0 0.0
    %206 = vmatmul.mubr.f32.gmra.mxu0 %v139
    %v207 = vpop.f32.mrf.mxu0
    %v208 = vadd.f32 %v130, %v207
    %v209 = vpop.f32.mrf.mxu0
    %v210 = vadd.f32 %v134, %v209
    %211 = vdwg.mxu0
    %v212 = vmax.f32 %v208, 0.0
    %v213 = vmax.f32 %v210, 0.0
    %v214 = vld [vmem:[#allocation7] sm:$0xff]
    %v215 = vld [vmem:[%s4] sm:$0xff]
    %v216 = vld [vmem:[%s5] sm:$0x1]
    %v218 = vlaneseq
    %v219 = vshrl.u32 %v218, 7
    %v220 = vsub.s32 0, %v219
    %v221 = vrot.slane %v216, %v220
    %vm223 = vcmask 64512
    %v225 = vsel %vm223, %v214, 0
    %227 = vmatprep.subr.mxu0 0.0
    %228 = vmatpush1.msra.mxu0 0.0
    %229 = vmatprep.subr.mxu0 0.0
    %230 = vmatpush1.msra.mxu0 0.0
    %231 = vmatprep.subr.mxu0 0.0
    %232 = vmatpush1.msra.mxu0 0.0
    %233 = vmatprep.subr.mxu0 0.0
    %234 = vmatpush1.msra.mxu0 0.0
    %235 = vmatprep.subr.mxu0 0.0
    %236 = vmatpush1.msra.mxu0 0.0
    %237 = vmatprep.subr.mxu0 0.0
    %238 = vmatpush1.msra.mxu0 0.0
    %239 = vmatprep.subr.mxu0 0.0
    %240 = vmatpush1.msra.mxu0 0.0
    %241 = vmatprep.subr.mxu0 0.0
    %242 = vmatpush1.msra.mxu0 0.0
    %243 = vmatprep.subr.mxu0 0.0
    %244 = vmatpush1.msra.mxu0 0.0
    %245 = vmatprep.subr.mxu0 0.0
    %246 = vmatpush1.msra.mxu0 0.0
    %247 = vmatprep.subr.mxu0 0.0
    %248 = vmatpush1.msra.mxu0 0.0
    %249 = vmatprep.subr.mxu0 0.0
    %250 = vmatpush1.msra.mxu0 0.0
    %251 = vmatprep.subr.mxu0 0.0
    %252 = vmatpush1.msra.mxu0 0.0
    %253 = vmatprep.subr.mxu0 0.0
    %254 = vmatpush1.msra.mxu0 0.0
    %255 = vmatprep.subr.mxu0 0.0
    %256 = vmatpush1.msra.mxu0 0.0
    %257 = vmatprep.subr.mxu0 0.0
    %258 = vmatpush1.msra.mxu0 %v215
    %259 = vmatprep.subr.mxu0 0.0
    %260 = vmatpush2.msra.mxu0 0.0
    %261 = vmatprep.subr.mxu0 0.0
    %262 = vmatpush2.msra.mxu0 0.0
    %263 = vmatprep.subr.mxu0 0.0
    %264 = vmatpush2.msra.mxu0 0.0
    %265 = vmatprep.subr.mxu0 0.0
    %266 = vmatpush2.msra.mxu0 0.0
    %267 = vmatprep.subr.mxu0 0.0
    %268 = vmatpush2.msra.mxu0 0.0
    %269 = vmatprep.subr.mxu0 0.0
    %270 = vmatpush2.msra.mxu0 0.0
    %271 = vmatprep.subr.mxu0 0.0
    %272 = vmatpush2.msra.mxu0 0.0
    %273 = vmatprep.subr.mxu0 0.0
    %274 = vmatpush2.msra.mxu0 0.0
    %275 = vmatprep.subr.mxu0 0.0
    %276 = vmatpush2.msra.mxu0 0.0
    %277 = vmatprep.subr.mxu0 0.0
    %278 = vmatpush2.msra.mxu0 0.0
    %279 = vmatprep.subr.mxu0 0.0
    %280 = vmatpush2.msra.mxu0 0.0
    %281 = vmatprep.subr.mxu0 0.0
    %282 = vmatpush2.msra.mxu0 0.0
    %283 = vmatprep.subr.mxu0 0.0
    %284 = vmatpush2.msra.mxu0 0.0
    %285 = vmatprep.subr.mxu0 0.0
    %286 = vmatpush2.msra.mxu0 0.0
    %287 = vmatprep.subr.mxu0 0.0
    %288 = vmatpush2.msra.mxu0 0.0
    %289 = vmatprep.subr.mxu0 0.0
    %290 = vmatpush2.msra.mxu0 0.0
    %291 = vmatprep.mubr.f32.mxu0 0.0
    %292 = vmatmul.mubr.f32.gmra.mxu0 %v225
    %v293 = vpop.f32.mrf.mxu0
    %v294 = vadd.f32 %v221, %v293
    %v295 = vpop.f32.mrf.mxu0
    %296 = vdwg.mxu0
    %v297 = vmax.f32 %v294, 0.0
    %v298 = vld [vmem:[#allocation12] sm:$0xff]
    %v299 = vld [vmem:[#allocation12 + $0x8] sm:$0xff]
    %v300 = vld [vmem:[#allocation12 + $0x10] sm:$0xff]
    %v301 = vld [vmem:[#allocation12 + $0x18] sm:$0xff]
    %v302 = vld [vmem:[#allocation12 + $0x20] sm:$0xff]
    %v303 = vld [vmem:[#allocation12 + $0x28] sm:$0xff]
    %v304 = vld [vmem:[#allocation12 + $0x30] sm:$0xff]
    %v305 = vld [vmem:[#allocation12 + $0x38] sm:$0xff]
    %v306 = vld [vmem:[#allocation12 + $0x40] sm:$0xff]
    %v307 = vld [vmem:[#allocation12 + $0x48] sm:$0xff]
    %v308 = vld [vmem:[#allocation12 + $0x50] sm:$0xff]
    %v309 = vld [vmem:[#allocation12 + $0x58] sm:$0xff]
    %v310 = vld [vmem:[#allocation12 + $0x60] sm:$0xff]
    %v311 = vld [vmem:[#allocation12 + $0x68] sm:$0xff]
    %v312 = vld [vmem:[#allocation12 + $0x70] sm:$0xff]
    %v313 = vld [vmem:[#allocation12 + $0x78] sm:$0xff]
    %v314 = vld [vmem:[#allocation12 + $0x80] sm:$0xff]
    %v315 = vld [vmem:[#allocation12 + $0x88] sm:$0xff]
    %v316 = vld [vmem:[#allocation12 + $0x90] sm:$0xff]
    %v317 = vld [vmem:[#allocation12 + $0x98] sm:$0xff]
    %v318 = vld [vmem:[#allocation12 + $0xa0] sm:$0xff]
    %v319 = vld [vmem:[#allocation12 + $0xa8] sm:$0xff]
    %v320 = vld [vmem:[#allocation12 + $0xb0] sm:$0xff]
    %v321 = vld [vmem:[#allocation12 + $0xb8] sm:$0xff]
    %v322 = vld [vmem:[#allocation12 + $0xc0] sm:$0xff]
    %v323 = vld [vmem:[#allocation12 + $0xc8] sm:$0xff]
    %v324 = vld [vmem:[#allocation12 + $0xd0] sm:$0xff]
    %v325 = vld [vmem:[#allocation12 + $0xd8] sm:$0xff]
    %v326 = vld [vmem:[#allocation12 + $0xe0] sm:$0xff]
    %v327 = vld [vmem:[#allocation12 + $0xe8] sm:$0xff]
    %v328 = vld [vmem:[#allocation12 + $0xf0] sm:$0xff]
    %v329 = vld [vmem:[#allocation12 + $0xf8] sm:$0xff]
    %v330 = vld [vmem:[%s7] sm:$0x1]
    %v332 = vlaneseq
    %v333 = vshrl.u32 %v332, 7
    %v334 = vsub.s32 0, %v333
    %v335 = vrot.slane %v330, %v334
    %337 = vmatprep.subr.mxu0 0.0
    %338 = vmatpush1.msra.mxu0 %v313
    %339 = vmatprep.subr.mxu0 0.0
    %340 = vmatpush1.msra.mxu0 %v312
    %341 = vmatprep.subr.mxu0 0.0
    %342 = vmatpush1.msra.mxu0 %v311
    %343 = vmatprep.subr.mxu0 0.0
    %344 = vmatpush1.msra.mxu0 %v310
    %345 = vmatprep.subr.mxu0 0.0
    %346 = vmatpush1.msra.mxu0 %v309
    %347 = vmatprep.subr.mxu0 0.0
    %348 = vmatpush1.msra.mxu0 %v308
    %349 = vmatprep.subr.mxu0 0.0
    %350 = vmatpush1.msra.mxu0 %v307
    %351 = vmatprep.subr.mxu0 0.0
    %352 = vmatpush1.msra.mxu0 %v306
    %353 = vmatprep.subr.mxu0 0.0
    %354 = vmatpush1.msra.mxu0 %v305
    %355 = vmatprep.subr.mxu0 0.0
    %356 = vmatpush1.msra.mxu0 %v304
    %357 = vmatprep.subr.mxu0 0.0
    %358 = vmatpush1.msra.mxu0 %v303
    %359 = vmatprep.subr.mxu0 0.0
    %360 = vmatpush1.msra.mxu0 %v302
    %361 = vmatprep.subr.mxu0 0.0
    %362 = vmatpush1.msra.mxu0 %v301
    %363 = vmatprep.subr.mxu0 0.0
    %364 = vmatpush1.msra.mxu0 %v300
    %365 = vmatprep.subr.mxu0 0.0
    %366 = vmatpush1.msra.mxu0 %v299
    %367 = vmatprep.subr.mxu0 0.0
    %368 = vmatpush1.msra.mxu0 %v298
    %369 = vmatprep.subr.mxu0 0.0
    %370 = vmatpush2.msra.mxu0 %v329
    %371 = vmatprep.subr.mxu0 0.0
    %372 = vmatpush2.msra.mxu0 %v328
    %373 = vmatprep.subr.mxu0 0.0
    %374 = vmatpush2.msra.mxu0 %v327
    %375 = vmatprep.subr.mxu0 0.0
    %376 = vmatpush2.msra.mxu0 %v326
    %377 = vmatprep.subr.mxu0 0.0
    %378 = vmatpush2.msra.mxu0 %v325
    %379 = vmatprep.subr.mxu0 0.0
    %380 = vmatpush2.msra.mxu0 %v324
    %381 = vmatprep.subr.mxu0 0.0
    %382 = vmatpush2.msra.mxu0 %v323
    %383 = vmatprep.subr.mxu0 0.0
    %384 = vmatpush2.msra.mxu0 %v322
    %385 = vmatprep.subr.mxu0 0.0
    %386 = vmatpush2.msra.mxu0 %v321
    %387 = vmatprep.subr.mxu0 0.0
    %388 = vmatpush2.msra.mxu0 %v320
    %389 = vmatprep.subr.mxu0 0.0
    %390 = vmatpush2.msra.mxu0 %v319
    %391 = vmatprep.subr.mxu0 0.0
    %392 = vmatpush2.msra.mxu0 %v318
    %393 = vmatprep.subr.mxu0 0.0
    %394 = vmatpush2.msra.mxu0 %v317
    %395 = vmatprep.subr.mxu0 0.0
    %396 = vmatpush2.msra.mxu0 %v316
    %397 = vmatprep.subr.mxu0 0.0
    %398 = vmatpush2.msra.mxu0 %v315
    %399 = vmatprep.subr.mxu0 0.0
    %400 = vmatpush2.msra.mxu0 %v314
    %401 = vmatprep.mubr.f32.mxu0 %v213
    %402 = vmatmul.mubr.f32.gmra.mxu0 %v212
    %v403 = vpop.f32.mrf.mxu0
    %v404 = vadd.f32 %v335, %v403
    %v405 = vpop.f32.mrf.mxu0
    %406 = vdwg.mxu0
    %v407 = vmax.f32 %v404, 0.0
    %408 = vst [vmem:[#allocation2] sm:$0xff] %v407
    %409 = vst [vmem:[#allocation2 + $0x8] sm:$0xff] %v297
    %v410 = vld [vmem:[#allocation2] sm:$0xff]
    %v411 = vld [vmem:[#allocation2 + $0x8] sm:$0xff]
    %v412 = vld [vmem:[#allocation13] sm:$0xff]
    %v413 = vld [vmem:[#allocation13 + $0x8] sm:$0xff]
    %v414 = vld [vmem:[#allocation13 + $0x10] sm:$0xff]
    %v415 = vld [vmem:[#allocation13 + $0x18] sm:$0xff]
    %v416 = vld [vmem:[#allocation13 + $0x20] sm:$0xff]
    %v417 = vld [vmem:[#allocation13 + $0x28] sm:$0xff]
    %v418 = vld [vmem:[#allocation13 + $0x30] sm:$0xff]
    %v419 = vld [vmem:[#allocation13 + $0x38] sm:$0xff]
    %v420 = vld [vmem:[#allocation13 + $0x40] sm:$0xff]
    %v421 = vld [vmem:[#allocation13 + $0x48] sm:$0xff]
    %v422 = vld [vmem:[#allocation13 + $0x50] sm:$0xff]
    %v423 = vld [vmem:[#allocation13 + $0x58] sm:$0xff]
    %v424 = vld [vmem:[#allocation13 + $0x60] sm:$0xff]
    %v425 = vld [vmem:[#allocation13 + $0x68] sm:$0xff]
    %v426 = vld [vmem:[#allocation13 + $0x70] sm:$0xff]
    %v427 = vld [vmem:[#allocation13 + $0x78] sm:$0xff]
    %v428 = vld [vmem:[#allocation13 + $0x80] sm:$0xff]
    %v429 = vld [vmem:[#allocation13 + $0x88] sm:$0xff]
    %v430 = vld [vmem:[#allocation13 + $0x90] sm:$0xff]
    %v431 = vld [vmem:[#allocation13 + $0x98] sm:$0xff]
    %v432 = vld [vmem:[#allocation13 + $0xa0] sm:$0xff]
    %v433 = vld [vmem:[#allocation13 + $0xa8] sm:$0xff]
    %v434 = vld [vmem:[#allocation13 + $0xb0] sm:$0xff]
    %v435 = vld [vmem:[#allocation13 + $0xb8] sm:$0xff]
    %v436 = vld [vmem:[#allocation13 + $0xc0] sm:$0xff]
    %v437 = vld [vmem:[#allocation13 + $0xc8] sm:$0xff]
    %v438 = vld [vmem:[#allocation13 + $0xd0] sm:$0xff]
    %v439 = vld [vmem:[#allocation13 + $0xd8] sm:$0xff]
    %v440 = vld [vmem:[#allocation13 + $0xe0] sm:$0xff]
    %v441 = vld [vmem:[#allocation13 + $0xe8] sm:$0xff]
    %v442 = vld [vmem:[#allocation13 + $0xf0] sm:$0xff]
    %v443 = vld [vmem:[#allocation13 + $0xf8] sm:$0xff]
    %v444 = vld [vmem:[%s9] sm:$0x1]
    %v446 = vlaneseq
    %v447 = vshrl.u32 %v446, 7
    %v448 = vsub.s32 0, %v447
    %v449 = vrot.slane %v444, %v448
    %451 = vmatprep.subr.mxu0 0.0
    %452 = vmatpush1.msra.mxu0 %v427
    %453 = vmatprep.subr.mxu0 0.0
    %454 = vmatpush1.msra.mxu0 %v426
    %455 = vmatprep.subr.mxu0 0.0
    %456 = vmatpush1.msra.mxu0 %v425
    %457 = vmatprep.subr.mxu0 0.0
    %458 = vmatpush1.msra.mxu0 %v424
    %459 = vmatprep.subr.mxu0 0.0
    %460 = vmatpush1.msra.mxu0 %v423
    %461 = vmatprep.subr.mxu0 0.0
    %462 = vmatpush1.msra.mxu0 %v422
    %463 = vmatprep.subr.mxu0 0.0
    %464 = vmatpush1.msra.mxu0 %v421
    %465 = vmatprep.subr.mxu0 0.0
    %466 = vmatpush1.msra.mxu0 %v420
    %467 = vmatprep.subr.mxu0 0.0
    %468 = vmatpush1.msra.mxu0 %v419
    %469 = vmatprep.subr.mxu0 0.0
    %470 = vmatpush1.msra.mxu0 %v418
    %471 = vmatprep.subr.mxu0 0.0
    %472 = vmatpush1.msra.mxu0 %v417
    %473 = vmatprep.subr.mxu0 0.0
    %474 = vmatpush1.msra.mxu0 %v416
    %475 = vmatprep.subr.mxu0 0.0
    %476 = vmatpush1.msra.mxu0 %v415
    %477 = vmatprep.subr.mxu0 0.0
    %478 = vmatpush1.msra.mxu0 %v414
    %479 = vmatprep.subr.mxu0 0.0
    %480 = vmatpush1.msra.mxu0 %v413
    %481 = vmatprep.subr.mxu0 0.0
    %482 = vmatpush1.msra.mxu0 %v412
    %483 = vmatprep.subr.mxu0 0.0
    %484 = vmatpush2.msra.mxu0 %v443
    %485 = vmatprep.subr.mxu0 0.0
    %486 = vmatpush2.msra.mxu0 %v442
    %487 = vmatprep.subr.mxu0 0.0
    %488 = vmatpush2.msra.mxu0 %v441
    %489 = vmatprep.subr.mxu0 0.0
    %490 = vmatpush2.msra.mxu0 %v440
    %491 = vmatprep.subr.mxu0 0.0
    %492 = vmatpush2.msra.mxu0 %v439
    %493 = vmatprep.subr.mxu0 0.0
    %494 = vmatpush2.msra.mxu0 %v438
    %495 = vmatprep.subr.mxu0 0.0
    %496 = vmatpush2.msra.mxu0 %v437
    %497 = vmatprep.subr.mxu0 0.0
    %498 = vmatpush2.msra.mxu0 %v436
    %499 = vmatprep.subr.mxu0 0.0
    %500 = vmatpush2.msra.mxu0 %v435
    %501 = vmatprep.subr.mxu0 0.0
    %502 = vmatpush2.msra.mxu0 %v434
    %503 = vmatprep.subr.mxu0 0.0
    %504 = vmatpush2.msra.mxu0 %v433
    %505 = vmatprep.subr.mxu0 0.0
    %506 = vmatpush2.msra.mxu0 %v432
    %507 = vmatprep.subr.mxu0 0.0
    %508 = vmatpush2.msra.mxu0 %v431
    %509 = vmatprep.subr.mxu0 0.0
    %510 = vmatpush2.msra.mxu0 %v430
    %511 = vmatprep.subr.mxu0 0.0
    %512 = vmatpush2.msra.mxu0 %v429
    %513 = vmatprep.subr.mxu0 0.0
    %514 = vmatpush2.msra.mxu0 %v428
    %515 = vmatprep.mubr.f32.mxu0 %v411
    %516 = vmatmul.mubr.f32.gmra.mxu0 %v410
    %v517 = vpop.f32.mrf.mxu0
    %v518 = vadd.f32 %v449, %v517
    %v519 = vpop.f32.mrf.mxu0
    %520 = vdwg.mxu0
    %v521 = vmax.f32 %v518, 0.0
    %v522 = vld [vmem:[%s10] sm:$0x1]
    %v523 = vld [vmem:[#allocation3] sm:$0x1]
    %525 = vset.pattern.permute.xlu0 0
    %526 = vperm.xlu0 %525, %v523
    %v527 = vpop.permute.xlu0 %526
    %v529 = vlaneseq
    %v530 = vshrl.u32 %v529, 7
    %v531 = vsub.s32 0, %v530
    %v532 = vrot.slane %v527, %v531
    %533 = vmatprep.subr.mxu0 0.0
    %534 = vmatpush1.xpose.msra.mxu0 0.0
    %535 = vmatprep.subr.mxu0 0.0
    %536 = vmatpush1.xpose.msra.mxu0 0.0
    %537 = vmatprep.subr.mxu0 0.0
    %538 = vmatpush1.xpose.msra.mxu0 0.0
    %539 = vmatprep.subr.mxu0 0.0
    %540 = vmatpush1.xpose.msra.mxu0 0.0
    %541 = vmatprep.subr.mxu0 0.0
    %542 = vmatpush1.xpose.msra.mxu0 0.0
    %543 = vmatprep.subr.mxu0 0.0
    %544 = vmatpush1.xpose.msra.mxu0 0.0
    %545 = vmatprep.subr.mxu0 0.0
    %546 = vmatpush1.xpose.msra.mxu0 0.0
    %547 = vmatprep.subr.mxu0 0.0
    %548 = vmatpush1.xpose.msra.mxu0 0.0
    %549 = vmatprep.subr.mxu0 0.0
    %550 = vmatpush1.xpose.msra.mxu0 0.0
    %551 = vmatprep.subr.mxu0 0.0
    %552 = vmatpush1.xpose.msra.mxu0 0.0
    %553 = vmatprep.subr.mxu0 0.0
    %554 = vmatpush1.xpose.msra.mxu0 0.0
    %555 = vmatprep.subr.mxu0 0.0
    %556 = vmatpush1.xpose.msra.mxu0 0.0
    %557 = vmatprep.subr.mxu0 0.0
    %558 = vmatpush1.xpose.msra.mxu0 0.0
    %559 = vmatprep.subr.mxu0 0.0
    %560 = vmatpush1.xpose.msra.mxu0 0.0
    %561 = vmatprep.subr.mxu0 0.0
    %562 = vmatpush1.xpose.msra.mxu0 0.0
    %563 = vmatprep.subr.mxu0 0.0
    %564 = vmatpush1.xpose.msra.mxu0 %v521
    %565 = vmatprep.subr.mxu0 0.0
    %566 = vmatpush2.xpose.msra.mxu0 0.0
    %567 = vmatprep.subr.mxu0 0.0
    %568 = vmatpush2.xpose.msra.mxu0 0.0
    %569 = vmatprep.subr.mxu0 0.0
    %570 = vmatpush2.xpose.msra.mxu0 0.0
    %571 = vmatprep.subr.mxu0 0.0
    %572 = vmatpush2.xpose.msra.mxu0 0.0
    %573 = vmatprep.subr.mxu0 0.0
    %574 = vmatpush2.xpose.msra.mxu0 0.0
    %575 = vmatprep.subr.mxu0 0.0
    %576 = vmatpush2.xpose.msra.mxu0 0.0
    %577 = vmatprep.subr.mxu0 0.0
    %578 = vmatpush2.xpose.msra.mxu0 0.0
    %579 = vmatprep.subr.mxu0 0.0
    %580 = vmatpush2.xpose.msra.mxu0 0.0
    %581 = vmatprep.subr.mxu0 0.0
    %582 = vmatpush2.xpose.msra.mxu0 0.0
    %583 = vmatprep.subr.mxu0 0.0
    %584 = vmatpush2.xpose.msra.mxu0 0.0
    %585 = vmatprep.subr.mxu0 0.0
    %586 = vmatpush2.xpose.msra.mxu0 0.0
    %587 = vmatprep.subr.mxu0 0.0
    %588 = vmatpush2.xpose.msra.mxu0 0.0
    %589 = vmatprep.subr.mxu0 0.0
    %590 = vmatpush2.xpose.msra.mxu0 0.0
    %591 = vmatprep.subr.mxu0 0.0
    %592 = vmatpush2.xpose.msra.mxu0 0.0
    %593 = vmatprep.subr.mxu0 0.0
    %594 = vmatpush2.xpose.msra.mxu0 0.0
    %595 = vmatprep.subr.mxu0 0.0
    %596 = vmatpush2.xpose.msra.mxu0 0.0
    %597 = vmatprep.mubr.f32.mxu0 0.0
    %598 = vmatmul.mubr.f32.gmra.mxu0 %v522
    %v599 = vpop.f32.mrf.mxu0
    %v600 = vadd.f32 %v532, %v599
    %v601 = vpop.f32.mrf.mxu0
    %602 = vdwg.mxu0
    %vm603 = vcmask 57344
    %604 = vst.msk [vmem:[#allocation15] sm:$0x1] %vm603, %v600
    // Predicated region
    $region74: #{tpu_custom_call.1} parent=1 // pred_check
      _
    $region75: #{tpu_custom_call.1} parent=1 // pred_check_branch
      %606 = sbr.rel (0) target = $region77
    $region76: #{tpu_custom_call.1} parent=1 // pred_region
      %s608 = ssub.s32 16, 16
      %609 = vsyncadd [#allocation6], %s608
      %s611 = sshll.u32 [#allocation15], 4
      %s612 = int_to_ptr.vmem [resolvable:$true] %s611
      %614 = dma.vmem_to_hbm [thread:$0]  %s612, 16, %s12, [#allocation6]
    $region77: #{tpu_custom_call.1} parent=1 // pred_fallthru
      _
    // Predicated region
    $region78: #{tpu_custom_call.1} parent=1 // pred_check
      _
    $region79: #{tpu_custom_call.1} parent=1 // pred_check_branch
      %616 = sbr.rel (0) target = $region81
    $region80: #{tpu_custom_call.1} parent=1 // pred_region
      %617 = dma.done [#allocation6], 16
    $region81: #{tpu_custom_call.1} parent=1 // pred_fallthru
      _
    %618 = vsyncpa [#allocation5], 1
    %619 = vsyncpa [#allocation8], 1
    %620 = vsyncpa [#allocation11], 1
    %621 = vsyncpa [#allocation14], 1
    %622 = vsyncpa [#allocation6], 1

</llo_original>
